<compile_context>
chip_gen: v7x
topology: tpu7x:2x2x1
jax: 0.10.0
libtpu: 0.0.40
codegen_flags: <defaults>
</compile_context>

<pallas_src>
import jax
import jax.numpy as jnp
from jax.experimental import pallas as pl
from jax.experimental.pallas import tpu as pltpu

EPS = 1e-5
_MIN_LANE = 128


# --------------------------------------------------------------------------
# Hardware-aware sizing helpers
# --------------------------------------------------------------------------
def _physical_vmem_bytes():
    """Physical VMEM per core; conservative 64 MiB (v7x) if the query fails."""
    cap = None
    try:
        info = pltpu.get_tpu_info()
        cap = getattr(info, "vmem_capacity_bytes", None)
    except Exception:
        cap = None
    if not cap:
        cap = 64 * 1024 * 1024
    # Clamp to a sane per-core range in case of odd reporting.
    return max(32 * 1024 * 1024, min(int(cap), 128 * 1024 * 1024))


def _sublane_multiple(dtype):
    """Second-to-last block-dim granularity: 8 sublanes x (32 / bit-width)."""
    itemsize = jnp.dtype(dtype).itemsize
    return 8 * max(1, 4 // itemsize)


def _block_footprint(tnc, thw, in_itemsize, out_itemsize, n_f32_tmp):
    """Per-grid-step VMEM bytes: double-buffered in/out blocks + f32 temps."""
    io = 2 * tnc * thw * in_itemsize + 2 * tnc * thw * out_itemsize
    return io + n_f32_tmp * tnc * thw * 4


def _choose_nc_tile(nc, hw, in_itemsize, out_itemsize, sub, budget):
    """Largest NC tile (multiple of `sub` dividing nc, or == nc) whose fused
    pipeline footprint fits `budget`. Returns None if nothing fits."""
    def fits(tnc):
        return _block_footprint(tnc, hw, in_itemsize, out_itemsize, 3) <= budget

    if nc % sub != 0:
        return nc if fits(nc) else None
    best = None
    tnc = sub
    while tnc <= nc:
        if nc % tnc == 0 and fits(tnc):
            best = tnc
        tnc += sub
    return best


def _choose_hw_tile(hw, tnc, in_itemsize, out_itemsize, budget):
    """Largest HW tile (multiple of 128 dividing hw) whose streaming-apply
    footprint fits `budget`. Returns None if nothing fits."""
    def fits(thw):
        return _block_footprint(tnc, thw, in_itemsize, out_itemsize, 2) <= budget

    best = None
    thw = _MIN_LANE
    while thw <= hw:
        if hw % thw == 0 and fits(thw):
            best = thw
        thw += _MIN_LANE
    return best


# --------------------------------------------------------------------------
# Kernels
# --------------------------------------------------------------------------
def _adain_fused_kernel(scale_ref, shift_ref, x_ref, o_ref):
    """Stats + normalize + style in one pass over a (TNC, HW) block.

    scale/shift are the full (NC, 1) columns, resident in VMEM (constant
    index_map => fetched once); slice the current window with pl.ds instead
    of issuing two tiny DMAs per grid step.
    """
    tnc, hw = x_ref.shape
    start = pl.multiple_of(pl.program_id(0) * tnc, tnc)
    scale = scale_ref[pl.ds(start, tnc), :]                       # (TNC, 1) f32
    shift = shift_ref[pl.ds(start, tnc), :]                       # (TNC, 1) f32

    x = x_ref[...].astype(jnp.float32)                            # (TNC, HW)
    inv_hw = 1.0 / hw
    mean = jnp.sum(x, axis=1, keepdims=True) * inv_hw             # (TNC, 1)
    centered = x - mean
    # Two-pass (centered) variance: the extra sweep is VALU-only on data that
    # is already in VMEM, hidden under the HBM-bound DMA; far better
    # conditioned than E[x^2] - mean^2.
    var = jnp.sum(centered * centered, axis=1, keepdims=True) * inv_hw
    a = jax.lax.rsqrt(var + EPS) * scale                          # (TNC, 1)
    # Single multiply-add apply sweep (2 VALU ops / element).
    o_ref[...] = (centered * a + shift).astype(o_ref.dtype)


def _stats_kernel(x_ref, sum_ref, ssq_ref):
    """Streaming sum / sum-of-squares over HW tiles. Accumulates directly in
    the f32 output blocks, which stay resident across the inner grid axis."""
    h = pl.program_id(1)

    @pl.when(h == 0)
    def _():
        sum_ref[...] = jnp.zeros_like(sum_ref)
        ssq_ref[...] = jnp.zeros_like(ssq_ref)

    x = x_ref[...].astype(jnp.float32)
    sum_ref[...] += jnp.sum(x, axis=1, keepdims=True)
    ssq_ref[...] += jnp.sum(x * x, axis=1, keepdims=True)


def _apply_kernel(a_ref, b_ref, x_ref, o_ref):
    """out = x * a + b over a (TNC, THW) block (a, b are per-row constants)."""
    o_ref[...] = (x_ref[...].astype(jnp.float32) * a_ref[...]
                  + b_ref[...]).astype(o_ref.dtype)


# --------------------------------------------------------------------------
# Wrapper
# --------------------------------------------------------------------------
def _style_affine(style, w_scale, b_scale, w_shift, b_shift, N, C):
    """One (N,S)@(S,2C) matmul in the wrapper; returns f32 (N*C, 1) scale/shift."""
    w = jnp.concatenate([w_scale, w_shift], axis=1).astype(jnp.float32)   # (S, 2C)
    b = jnp.concatenate([b_scale, b_shift], axis=0).astype(jnp.float32)   # (2C,)
    affine = style.astype(jnp.float32) @ w + b                            # (N, 2C)
    scale = affine[:, :C].reshape(N * C, 1)
    shift = affine[:, C:].reshape(N * C, 1)
    return scale, shift


def _adain_xla(x, scale, shift):
    """Plain-XLA fallback on (NC, HW) data (HW < 128 layers / odd shapes)."""
    xf = x.astype(jnp.float32)
    mean = jnp.mean(xf, axis=1, keepdims=True)
    var = jnp.mean(jnp.square(xf - mean), axis=1, keepdims=True)
    out = (xf - mean) * (jax.lax.rsqrt(var + EPS) * scale) + shift
    return out.astype(x.dtype)


def adain(content, style, w_scale, b_scale, w_shift, b_shift,
          *, vmem_budget_bytes=None):
    """content: (N, C, H, W); style: (N, S); weights: (S, C); biases: (C,)."""
    N, C, H, W = content.shape
    NC, HW = N * C, H * W

    scale, shift = _style_affine(style, w_scale, b_scale, w_shift, b_shift, N, C)
    x = content.reshape(NC, HW)

    # ---- generation-aware sizing -------------------------------------------
    vmem = _physical_vmem_bytes()
    budget = vmem_budget_bytes if vmem_budget_bytes is not None else vmem // 2
    vmem_limit = (vmem * 3) // 4
    in_isz = jnp.dtype(content.dtype).itemsize
    out_isz = in_isz
    sub = _sublane_multiple(content.dtype)

    # ---- small-HW layers: <128-lane last dim would force masked partial
    #      stores and waste most of each lane; plain XLA wins here. ----------
    if HW < _MIN_LANE:
        return _adain_xla(x, scale, shift).reshape(N, C, H, W)

    # ---- path 1: fused single-pass kernel (stats + apply per NC tile) ------
    tnc = _choose_nc_tile(NC, HW, in_isz, out_isz, sub, budget)
    if tnc is not None:
        out = pl.pallas_call(
            _adain_fused_kernel,
            out_shape=jax.ShapeDtypeStruct((NC, HW), content.dtype),
            grid_spec=pltpu.PrefetchScalarGridSpec(
                num_scalar_prefetch=0,
                grid=(NC // tnc,),      # flat 1-D parallel grid (2-TC balance)
                in_specs=[
                    pl.BlockSpec((NC, 1), lambda i: (0, 0)),     # scale, resident
                    pl.BlockSpec((NC, 1), lambda i: (0, 0)),     # shift, resident
                    pl.BlockSpec((tnc, HW), lambda i: (i, 0)),   # content
                ],
                out_specs=pl.BlockSpec((tnc, HW), lambda i: (i, 0)),
            ),
            compiler_params=pltpu.CompilerParams(
                dimension_semantics=("parallel",),
                vmem_limit_bytes=vmem_limit,
            ),
        )(scale, shift, x)
        return out.reshape(N, C, H, W)

    # ---- path 2: streaming (HW-tiled) stats + apply for very large HW ------
    tnc_s = sub if NC % sub == 0 else NC
    thw = _choose_hw_tile(HW, tnc_s, in_isz, out_isz, budget)
    if thw is None:
        # No lane-aligned HW tiling fits the budget; fall back rather than spill.
        return _adain_xla(x, scale, shift).reshape(N, C, H, W)

    grid = (NC // tnc_s, HW // thw)

    sums, ssqs = pl.pallas_call(
        _stats_kernel,
        out_shape=(jax.ShapeDtypeStruct((NC, 1), jnp.float32),
                   jax.ShapeDtypeStruct((NC, 1), jnp.float32)),
        grid_spec=pltpu.PrefetchScalarGridSpec(
            num_scalar_prefetch=0,
            grid=grid,
            in_specs=[pl.BlockSpec((tnc_s, thw), lambda i, h: (i, h))],
            out_specs=(pl.BlockSpec((tnc_s, 1), lambda i, h: (i, 0)),
                       pl.BlockSpec((tnc_s, 1), lambda i, h: (i, 0))),
        ),
        compiler_params=pltpu.CompilerParams(
            dimension_semantics=("parallel", "arbitrary"),
            vmem_limit_bytes=vmem_limit,
        ),
    )(x)

    inv_hw = 1.0 / HW
    mean = sums * inv_hw
    var = jnp.maximum(ssqs * inv_hw - mean * mean, 0.0)
    a = jax.lax.rsqrt(var + EPS) * scale           # (NC, 1)
    b = shift - mean * a                           # (NC, 1)

    out = pl.pallas_call(
        _apply_kernel,
        out_shape=jax.ShapeDtypeStruct((NC, HW), content.dtype),
        grid_spec=pltpu.PrefetchScalarGridSpec(
            num_scalar_prefetch=0,
            grid=grid,
            in_specs=[
                pl.BlockSpec((tnc_s, 1), lambda i, h: (i, 0)),    # a (no re-DMA across h)
                pl.BlockSpec((tnc_s, 1), lambda i, h: (i, 0)),    # b
                pl.BlockSpec((tnc_s, thw), lambda i, h: (i, h)),  # content
            ],
            out_specs=pl.BlockSpec((tnc_s, thw), lambda i, h: (i, h)),
        ),
        compiler_params=pltpu.CompilerParams(
            dimension_semantics=("parallel", "parallel"),
            vmem_limit_bytes=vmem_limit,
        ),
    )(a, b, x)
    return out.reshape(N, C, H, W)


# --------------------------------------------------------------------------
# Reference + tests
# --------------------------------------------------------------------------
def adain_reference(content, style, w_scale, b_scale, w_shift, b_shift):
    scale = style @ w_scale + b_scale              # (N, C)
    shift = style @ w_shift + b_shift              # (N, C)
    mean = jnp.mean(content, axis=(2, 3), keepdims=True)
    var = jnp.var(content, axis=(2, 3), keepdims=True)
    normed = (content - mean) * jax.lax.rsqrt(var + EPS)
    return scale[:, :, None, None] * normed + shift[:, :, None, None]


if __name__ == "__main__":
    key = jax.random.PRNGKey(0)

    def make_case(k, N, C, H, W, S):
        k1, k2, k3, k4, k5, k6 = jax.random.split(k, 6)
        content = jax.random.normal(k1, (N, C, H, W), dtype=jnp.float32)
        style = jax.random.normal(k2, (N, S), dtype=jnp.float32)
        bound = 1.0 / (S ** 0.5)
        w_scale = jax.random.uniform(k3, (S, C), minval=-bound, maxval=bound, dtype=jnp.float32)
        b_scale = jax.random.uniform(k4, (C,), minval=-bound, maxval=bound, dtype=jnp.float32)
        w_shift = jax.random.uniform(k5, (S, C), minval=-bound, maxval=bound, dtype=jnp.float32)
        b_shift = jax.random.uniform(k6, (C,), minval=-bound, maxval=bound, dtype=jnp.float32)
        return content, style, w_scale, b_scale, w_shift, b_shift

    k0, k1, k2 = jax.random.split(key, 3)

    # Case 1: main fused-kernel path (matches the module's typical call).
    args = make_case(k0, N=2, C=4, H=16, W=16, S=8)
    out = jax.block_until_ready(adain(*args))
    ref = adain_reference(*args)
    assert jnp.allclose(out, ref, atol=1e-4, rtol=1e-4), "fused path mismatch"

    # Case 2: exercise the footprint-checked streaming (HW-tiled) path by
    # forcing a tiny VMEM budget at a small shape.
    args = make_case(k1, N=1, C=16, H=64, W=64, S=8)
    out = jax.block_until_ready(adain(*args, vmem_budget_bytes=200_000))
    ref = adain_reference(*args)
    assert jnp.allclose(out, ref, atol=1e-4, rtol=1e-4), "streaming path mismatch"

    # Case 3: small-HW (HW < 128) early-resolution layer -> plain XLA path.
    args = make_case(k2, N=2, C=8, H=8, W=8, S=8)
    out = jax.block_until_ready(adain(*args))
    ref = adain_reference(*args)
    assert jnp.allclose(out, ref, atol=1e-4, rtol=1e-4), "small-HW path mismatch"

    print("KERNEL_OK")
</pallas_src>

<mosaic_0001>
module attributes {stable_mosaic.version = 11 : i64} {
  func.func @_adain_fused_kernel(%arg0: i32, %arg1: memref<8x1xf32, #tpu.memory_space<vmem>>, %arg2: memref<8x1xf32, #tpu.memory_space<vmem>>, %arg3: memref<8x256xf32, #tpu.memory_space<vmem>>, %arg4: memref<8x256xf32, #tpu.memory_space<vmem>>) attributes {dimension_semantics = [#tpu.dimension_semantics<parallel>], iteration_bounds = array<i64: 1>, scalar_prefetch = 0 : i64, scratch_operands = 0 : i64, tpu.core_type = #tpu.core_type<tc>, window_params = [{pipeline_mode = #tpu.pipeline_mode<synchronous>, transform_indices = @transform_0, window_bounds = array<i64: 8, 1>}, {pipeline_mode = #tpu.pipeline_mode<synchronous>, transform_indices = @transform_1, window_bounds = array<i64: 8, 1>}, {transform_indices = @transform_2, window_bounds = array<i64: 8, 256>}, {transform_indices = @transform_3, window_bounds = array<i64: 8, 256>}]} {
    %c8_i32 = arith.constant 8 : i32
    %0 = arith.muli %arg0, %c8_i32 : i32
    %1 = tpu.assume_multiple %0, 8 : i32
    %2 = arith.index_cast %1 : i32 to index
    %c0 = arith.constant 0 : index
    %3 = vector.load %arg1[%2, %c0] : memref<8x1xf32, #tpu.memory_space<vmem>>, vector<8x1xf32>
    %4 = arith.index_cast %1 : i32 to index
    %c0_0 = arith.constant 0 : index
    %5 = vector.load %arg2[%4, %c0_0] : memref<8x1xf32, #tpu.memory_space<vmem>>, vector<8x1xf32>
    %c0_1 = arith.constant 0 : index
    %c0_2 = arith.constant 0 : index
    %6 = vector.load %arg3[%c0_1, %c0_2] : memref<8x256xf32, #tpu.memory_space<vmem>>, vector<8x256xf32>
    %cst = arith.constant dense<0.000000e+00> : vector<8xf32>
    %7 = vector.multi_reduction <add>, %6, %cst [1] : vector<8x256xf32> to vector<8xf32>
    %8 = vector.shape_cast %7 : vector<8xf32> to vector<8x1xf32>
    %cst_3 = arith.constant 3.906250e-03 : f32
    %9 = vector.broadcast %cst_3 : f32 to vector<8x1xf32>
    %10 = arith.mulf %8, %9 : vector<8x1xf32>
    %11 = vector.broadcast %10 : vector<8x1xf32> to vector<8x256xf32>
    %12 = arith.subf %6, %11 : vector<8x256xf32>
    %13 = arith.mulf %12, %12 : vector<8x256xf32>
    %cst_4 = arith.constant dense<0.000000e+00> : vector<8xf32>
    %14 = vector.multi_reduction <add>, %13, %cst_4 [1] : vector<8x256xf32> to vector<8xf32>
    %15 = vector.shape_cast %14 : vector<8xf32> to vector<8x1xf32>
    %cst_5 = arith.constant 3.906250e-03 : f32
    %16 = vector.broadcast %cst_5 : f32 to vector<8x1xf32>
    %17 = arith.mulf %15, %16 : vector<8x1xf32>
    %cst_6 = arith.constant 9.99999974E-6 : f32
    %18 = vector.broadcast %cst_6 : f32 to vector<8x1xf32>
    %19 = arith.addf %17, %18 : vector<8x1xf32>
    %20 = math.rsqrt %19 : vector<8x1xf32>
    %21 = arith.mulf %20, %3 : vector<8x1xf32>
    %22 = vector.broadcast %21 : vector<8x1xf32> to vector<8x256xf32>
    %23 = arith.mulf %12, %22 : vector<8x256xf32>
    %24 = vector.broadcast %5 : vector<8x1xf32> to vector<8x256xf32>
    %25 = arith.addf %23, %24 : vector<8x256xf32>
    %c0_7 = arith.constant 0 : index
    %c0_8 = arith.constant 0 : index
    %26 = vector.load %arg4[%c0_7, %c0_8] : memref<8x256xf32, #tpu.memory_space<vmem>>, vector<8x256xf32>
    tpu.vector_store %arg4[%c0_7, %c0_8], %25 {strides = array<i32>} : memref<8x256xf32, #tpu.memory_space<vmem>>, vector<8x256xf32>,
    return
  }
  func.func @transform_0(%arg0: i32) -> (i32, i32) {
    %c0_i32 = arith.constant 0 : i32
    %c0_i32_0 = arith.constant 0 : i32
    %c0_i32_1 = arith.constant 0 : i32
    return %c0_i32, %c0_i32_0 : i32, i32
  }
  func.func @transform_1(%arg0: i32) -> (i32, i32) {
    %c0_i32 = arith.constant 0 : i32
    %c0_i32_0 = arith.constant 0 : i32
    %c0_i32_1 = arith.constant 0 : i32
    return %c0_i32, %c0_i32_0 : i32, i32
  }
  func.func @transform_2(%arg0: i32) -> (i32, i32) {
    %c0_i32 = arith.constant 0 : i32
    %c0_i32_0 = arith.constant 0 : i32
    return %arg0, %c0_i32 : i32, i32
  }
  func.func @transform_3(%arg0: i32) -> (i32, i32) {
    %c0_i32 = arith.constant 0 : i32
    %c0_i32_0 = arith.constant 0 : i32
    return %arg0, %c0_i32 : i32, i32
  }
}

</mosaic_0001>

<llo_original>
// kernel: tpu_custom_call.1
$region0: #{tpu_custom_call.1}
  #allocation0 [shape = 'u32[]', space=smem, size = 0x4, offset = 0x4, fixed_abs, tag = 'smem constant byte address 0x4 - core index']
  #allocation1 [shape = 'u32[144,128]{1,0:T(1,128)}', space=vmem, size = 0x12000, scoped, tag = 'internal scratch']
  %s0 = inlined_call_operand.vmem [shape: f32[8,1], index: 0, kind: input, shape index: {}]
  %s1 = inlined_call_operand.vmem [shape: f32[8,1], index: 1, kind: input, shape index: {}]
  %s2 = inlined_call_operand.vmem [shape: f32[8,256], index: 2, kind: input, shape index: {}]
  %s3 = inlined_call_operand.hbm [shape: f32[8,256], index: 3, kind: output, shape index: {}]
  %s4 = sld [smem:[#allocation0]]
  $region22: #{tpu_custom_call.1} parent=0
    _
  %s6 = ssub.s32 1, %s4
  %s7 = scalar_select 0, %s6, %s4
  $region1: #{tpu_custom_call.1} parent=0
    #allocation2 [shape = 'u8[8192]{0}', space=vmem, size = 0x2000, scoped, tag = 'output window, operand 0, single buffered']
    #allocation3 [shape = 's32[1]{0}', space=sflag, size = 0x4, scoped, tag = 'scoped memory for tpu_custom_call.1']
    %8 = vsyncpa [#allocation3], 0
    // Predicated region
    $region2: #{tpu_custom_call.1} parent=1 // pred_check
      _
    $region3: #{tpu_custom_call.1} parent=1 // pred_check_branch
      %10 = sbr.rel (0) target = $region5
    $region4: #{tpu_custom_call.1} parent=1 // pred_region
      _
    $region5: #{tpu_custom_call.1} parent=1 // pred_fallthru
      _
    // Predicated region
    $region6: #{tpu_custom_call.1} parent=1 // pred_check
      _
    $region7: #{tpu_custom_call.1} parent=1 // pred_check_branch
      %12 = sbr.rel (0) target = $region9
    $region8: #{tpu_custom_call.1} parent=1 // pred_region
      _
    $region9: #{tpu_custom_call.1} parent=1 // pred_fallthru
      _
    // Predicated region
    $region10: #{tpu_custom_call.1} parent=1 // pred_check
      _
    $region11: #{tpu_custom_call.1} parent=1 // pred_check_branch
      %14 = sbr.rel (0) target = $region13
    $region12: #{tpu_custom_call.1} parent=1 // pred_region
      _
    $region13: #{tpu_custom_call.1} parent=1 // pred_fallthru
      _
    %s15 = smul.u32 0, 8
    %s16 = scalar_lea.vmem %s0, %s15
    %v17 = vld [vmem:[%s16] sm:$0xff]
    %s18 = scalar_lea.vmem %s1, %s15
    %v19 = vld [vmem:[%s18] sm:$0xff]
    %v20 = vld [vmem:[%s2] sm:$0xff]
    %v21 = vld [vmem:[%s2 + $0x8] sm:$0xff]
    %v22 = vadd.f32 %v20, %v21
    %23 = vadd.xlane.f32.xlu0 %v22
    %v24 = vpop.xlane.xlu0 %23
    %v25 = vmul.f32 %v24, 0.00390625
    %v26 = vsub.f32 %v20, %v25
    %v27 = vsub.f32 %v21, %v25
    %v28 = vmul.f32 %v26, %v26
    %v29 = vmul.f32 %v27, %v27
    %v30 = vadd.f32 %v28, %v29
    %31 = vadd.xlane.f32.xlu0 %v30
    %v32 = vpop.xlane.xlu0 %31
    %v33 = vmul.f32 %v32, 0.00390625
    %v34 = vadd.f32 %v33, 1e-05
    %v35 = vrsqrt.pop %v34
    %v36 = vmul.f32 %v35, %v17
    %38 = vset.pattern.permute.xlu0 0
    %39 = vperm.xlu0 %38, %v36
    %v40 = vpop.permute.xlu0 %39
    %v42 = vmul.f32 %v26, %v40
    %v43 = vmul.f32 %v27, %v40
    %45 = vset.pattern.permute.xlu0 0
    %46 = vperm.xlu0 %45, %v19
    %v47 = vpop.permute.xlu0 %46
    %v49 = vadd.f32 %v42, %v47
    %v50 = vadd.f32 %v43, %v47
    %51 = vst [vmem:[#allocation2] sm:$0xff] %v49
    %52 = vst [vmem:[#allocation2 + $0x8] sm:$0xff] %v50
    // Predicated region
    $region14: #{tpu_custom_call.1} parent=1 // pred_check
      _
    $region15: #{tpu_custom_call.1} parent=1 // pred_check_branch
      %54 = sbr.rel (0) target = $region17
    $region16: #{tpu_custom_call.1} parent=1 // pred_region
      %s56 = ssub.s32 256, 256
      %57 = vsyncadd [#allocation3], %s56
      %s59 = sshll.u32 [#allocation2], 4
      %s60 = int_to_ptr.vmem [resolvable:$true] %s59
      %62 = dma.vmem_to_hbm [thread:$0]  %s60, 256, %s3, [#allocation3]
    $region17: #{tpu_custom_call.1} parent=1 // pred_fallthru
      _
    // Predicated region
    $region18: #{tpu_custom_call.1} parent=1 // pred_check
      _
    $region19: #{tpu_custom_call.1} parent=1 // pred_check_branch
      %64 = sbr.rel (0) target = $region21
    $region20: #{tpu_custom_call.1} parent=1 // pred_region
      %65 = dma.done [#allocation3], 256
    $region21: #{tpu_custom_call.1} parent=1 // pred_fallthru
      _
    %66 = vsyncpa [#allocation3], 1

</llo_original>
